<compile_context>
chip_gen: v7x
topology: tpu7x:2x2x1
jax: 0.10.0
libtpu: 0.0.40
codegen_flags: <defaults>
</compile_context>

<pallas_src>
import jax
import jax.numpy as jnp
from jax import lax
from jax.experimental import pallas as pl
from jax.experimental.pallas import tpu as pltpu


# ----------------------------------------------------------------------------
# Fused kernel: conv3x3(stride (1,2)) + bias + BatchNorm2d(training) + ReLU
# ----------------------------------------------------------------------------
def _econv_bn_relu_kernel(xcol_ref, w_ref, b_ref, g_ref, beta_ref, o_ref):
    # xcol_ref : (N, H+2, Wout, 3*Cin) f32 — zero-padded input with the three
    #            stride-2 width taps folded into the last (lane) axis.
    # w_ref    : (3, 3*Cin, Cout) bf16 — one (3*Cin, Cout) matrix per height tap.
    # b_ref    : (1, Cout) f32 conv bias.
    # g_ref    : (1, Cout) f32 BN gamma;   beta_ref : (1, Cout) f32 BN beta.
    # o_ref    : (N, Hout, Wout, Cout) f32.
    N, Hout, Wout, Cout = o_ref.shape
    K = xcol_ref.shape[-1]
    M = N * Hout * Wout

    # Conv as 3 chained MXU matmuls (one per height tap), K = 3*Cin, M = N*H*Wout.
    acc = jnp.zeros((M, Cout), jnp.float32)
    for dh in range(3):
        patch = xcol_ref[:, dh:dh + Hout, :, :].reshape(M, K)
        acc = acc + jnp.dot(patch.astype(jnp.bfloat16), w_ref[dh],
                            preferred_element_type=jnp.float32)
    acc = acc + b_ref[...]                                    # conv bias

    # BatchNorm2d, PyTorch-default training mode: biased batch statistics over
    # (N, H, W) per output channel, eps = 1e-5.
    # TODO(synk): eval-mode BN (running stats) would use stored buffers instead.
    mean = jnp.mean(acc, axis=0, keepdims=True)               # (1, Cout)
    var = jnp.mean((acc - mean) ** 2, axis=0, keepdims=True)  # biased variance
    y = (acc - mean) * lax.rsqrt(var + 1e-5) * g_ref[...] + beta_ref[...]

    # ReLU + store.  (Cout=32 < 128 lanes -> masked stores; the whole output is
    # only ~32 KiB so repacking to a lane-dense slab would cost about as much
    # in relayout as it saves in store slots at this size.)
    o_ref[...] = jnp.maximum(y, 0.0).reshape(N, Hout, Wout, Cout)


# ----------------------------------------------------------------------------
# Wrapper
# ----------------------------------------------------------------------------
def econv_forward(x_nchw, params):
    """EConv forward.  x_nchw: (N, Cin, H, W) f32 -> (N, Cout, H, Wout) f32."""
    w, b = params["w"], params["b"]                 # w: (3, 3, Cin, Cout) HWIO
    gamma, beta = params["gamma"], params["beta"]
    Cout = w.shape[-1]

    x = jnp.transpose(x_nchw, (0, 2, 3, 1))         # NCHW -> NHWC
    N, H, W, Cin = x.shape
    Hout = H                                        # stride_h=1, pad=1, k=3
    Wout = (W - 1) // 2 + 1                         # stride_w=2, pad=1, k=3

    # Zero-pad and fold the three stride-2 width taps into the channel axis:
    #   xcol[n, h, j, dw*Cin + c] = xpad[n, h, 2*j + dw, c]
    xp = jnp.pad(x, ((0, 0), (1, 1), (1, 1), (0, 0)))
    taps = [xp[:, :, dw:dw + 2 * Wout:2, :] for dw in range(3)]
    xcol = jnp.stack(taps, axis=3).reshape(N, H + 2, Wout, 3 * Cin)

    wk = w.reshape(3, 3 * Cin, Cout).astype(jnp.bfloat16)   # per-height-tap mats
    b2 = b.reshape(1, Cout).astype(jnp.float32)
    g2 = gamma.reshape(1, Cout).astype(jnp.float32)
    bt2 = beta.reshape(1, Cout).astype(jnp.float32)

    out_nhwc = pl.pallas_call(
        _econv_bn_relu_kernel,
        out_shape=jax.ShapeDtypeStruct((N, Hout, Wout, Cout), jnp.float32),
        grid=(1,),   # whole batch in one step: BN needs global batch statistics
        in_specs=[
            pl.BlockSpec((N, H + 2, Wout, 3 * Cin), lambda i: (0, 0, 0, 0)),
            pl.BlockSpec((3, 3 * Cin, Cout), lambda i: (0, 0, 0)),
            pl.BlockSpec((1, Cout), lambda i: (0, 0)),
            pl.BlockSpec((1, Cout), lambda i: (0, 0)),
            pl.BlockSpec((1, Cout), lambda i: (0, 0)),
        ],
        out_specs=pl.BlockSpec((N, Hout, Wout, Cout), lambda i: (0, 0, 0, 0)),
        compiler_params=pltpu.CompilerParams(
            dimension_semantics=("arbitrary",)),
    )(xcol, wk, b2, g2, bt2)

    return jnp.transpose(out_nhwc, (0, 3, 1, 2))    # back to NCHW


# ----------------------------------------------------------------------------
# Pure-JAX reference (same bf16-input / f32-accumulation numerics)
# ----------------------------------------------------------------------------
def econv_reference(x_nchw, params):
    x = jnp.transpose(x_nchw, (0, 2, 3, 1))
    y = lax.conv_general_dilated(
        x.astype(jnp.bfloat16), params["w"].astype(jnp.bfloat16),
        window_strides=(1, 2), padding=((1, 1), (1, 1)),
        dimension_numbers=("NHWC", "HWIO", "NHWC"),
        preferred_element_type=jnp.float32)
    y = y + params["b"][None, None, None, :]
    mean = jnp.mean(y, axis=(0, 1, 2))
    var = jnp.mean((y - mean) ** 2, axis=(0, 1, 2))
    out = (y - mean) * lax.rsqrt(var + 1e-5) * params["gamma"] + params["beta"]
    out = jnp.maximum(out, 0.0)
    return jnp.transpose(out, (0, 3, 1, 2))


# ----------------------------------------------------------------------------
def init_params(key, in_channels, out_channels):
    # Deterministic synthetic init; conv weight stored as HWIO = (3,3,Cin,Cout).
    k1, k2, k3, k4 = jax.random.split(key, 4)
    fan_in = in_channels * 9
    bound = 1.0 / (fan_in ** 0.5)
    w = jax.random.uniform(k1, (3, 3, in_channels, out_channels), jnp.float32,
                           -bound, bound)
    b = jax.random.uniform(k2, (out_channels,), jnp.float32, -bound, bound)
    gamma = jax.random.uniform(k3, (out_channels,), jnp.float32, 0.5, 1.5)
    beta = 0.1 * jax.random.normal(k4, (out_channels,), jnp.float32)
    return {"w": w, "b": b, "gamma": gamma, "beta": beta}


if __name__ == "__main__":
    key = jax.random.PRNGKey(0)
    k_x, k_p = jax.random.split(key)

    N, Cin, Cout, H, W = 2, 4, 32, 16, 16          # fbins = W = 16
    x = jax.random.normal(k_x, (N, Cin, H, W), jnp.float32)   # NCHW (PyTorch-style)
    params = init_params(k_p, Cin, Cout)

    out = jax.block_until_ready(econv_forward(x, params))
    ref = jax.block_until_ready(econv_reference(x, params))

    Wout = (W - 1) // 2 + 1
    assert out.shape == (N, Cout, H, Wout), out.shape
    err = float(jnp.max(jnp.abs(out - ref)))
    # Kernel and reference both use bf16 MXU inputs with f32 accumulation, so
    # the residual difference is accumulation-order only.
    assert jnp.allclose(out, ref, rtol=1e-3, atol=1e-3), err
    print("KERNEL_OK")
</pallas_src>

<mosaic_0001>
module attributes {stable_mosaic.version = 11 : i64} {
  func.func @_econv_bn_relu_kernel(%arg0: i32, %arg1: memref<2x18x8x12xf32, #tpu.memory_space<vmem>>, %arg2: memref<3x12x32xbf16, #tpu.memory_space<vmem>>, %arg3: memref<1x32xf32, #tpu.memory_space<vmem>>, %arg4: memref<1x32xf32, #tpu.memory_space<vmem>>, %arg5: memref<1x32xf32, #tpu.memory_space<vmem>>, %arg6: memref<2x16x8x32xf32, #tpu.memory_space<vmem>>) attributes {dimension_semantics = [#tpu.dimension_semantics<arbitrary>], iteration_bounds = array<i64: 1>, scalar_prefetch = 0 : i64, scratch_operands = 0 : i64, tpu.core_type = #tpu.core_type<tc>, window_params = [{pipeline_mode = #tpu.pipeline_mode<synchronous>, transform_indices = @transform_0, window_bounds = array<i64: 2, 18, 8, 12>}, {pipeline_mode = #tpu.pipeline_mode<synchronous>, transform_indices = @transform_1, window_bounds = array<i64: 3, 12, 32>}, {pipeline_mode = #tpu.pipeline_mode<synchronous>, transform_indices = @transform_2, window_bounds = array<i64: 1, 32>}, {pipeline_mode = #tpu.pipeline_mode<synchronous>, transform_indices = @transform_3, window_bounds = array<i64: 1, 32>}, {pipeline_mode = #tpu.pipeline_mode<synchronous>, transform_indices = @transform_4, window_bounds = array<i64: 1, 32>}, {pipeline_mode = #tpu.pipeline_mode<synchronous>, transform_indices = @transform_5, window_bounds = array<i64: 2, 16, 8, 32>}]} {
    %cst = arith.constant 0.000000e+00 : f32
    %0 = vector.broadcast %cst : f32 to vector<256x32xf32>
    %c0 = arith.constant 0 : index
    %c0_0 = arith.constant 0 : index
    %c0_1 = arith.constant 0 : index
    %c0_2 = arith.constant 0 : index
    %1 = vector.load %arg1[%c0, %c0_0, %c0_1, %c0_2] : memref<2x18x8x12xf32, #tpu.memory_space<vmem>>, vector<2x16x8x12xf32>
    %2 = vector.shape_cast %1 : vector<2x16x8x12xf32> to vector<256x12xf32>
    %3 = arith.truncf %2 : vector<256x12xf32> to vector<256x12xbf16>
    %c0_3 = arith.constant 0 : index
    %c0_4 = arith.constant 0 : index
    %c0_5 = arith.constant 0 : index
    %4 = vector.load %arg2[%c0_3, %c0_4, %c0_5] : memref<3x12x32xbf16, #tpu.memory_space<vmem>>, vector<1x12x32xbf16>
    %5 = vector.shape_cast %4 : vector<1x12x32xbf16> to vector<12x32xbf16>
    %cst_6 = arith.constant dense<0.000000e+00> : vector<256x32xf32>
    %6 = tpu.matmul %3, %5, %cst_6 {dimension_numbers = #tpu.dot_dimension_numbers<[1], [0], [0], [1], [0, 0, 1, 1], [], []>} : vector<256x12xbf16>, vector<12x32xbf16>, vector<256x32xf32> -> vector<256x32xf32>
    %7 = arith.addf %0, %6 : vector<256x32xf32>
    %c0_7 = arith.constant 0 : index
    %c1 = arith.constant 1 : index
    %c0_8 = arith.constant 0 : index
    %c0_9 = arith.constant 0 : index
    %8 = vector.load %arg1[%c0_7, %c1, %c0_8, %c0_9] : memref<2x18x8x12xf32, #tpu.memory_space<vmem>>, vector<2x16x8x12xf32>
    %9 = vector.shape_cast %8 : vector<2x16x8x12xf32> to vector<256x12xf32>
    %10 = arith.truncf %9 : vector<256x12xf32> to vector<256x12xbf16>
    %c1_10 = arith.constant 1 : index
    %c0_11 = arith.constant 0 : index
    %c0_12 = arith.constant 0 : index
    %11 = vector.load %arg2[%c1_10, %c0_11, %c0_12] : memref<3x12x32xbf16, #tpu.memory_space<vmem>>, vector<1x12x32xbf16>
    %12 = vector.shape_cast %11 : vector<1x12x32xbf16> to vector<12x32xbf16>
    %cst_13 = arith.constant dense<0.000000e+00> : vector<256x32xf32>
    %13 = tpu.matmul %10, %12, %cst_13 {dimension_numbers = #tpu.dot_dimension_numbers<[1], [0], [0], [1], [0, 0, 1, 1], [], []>} : vector<256x12xbf16>, vector<12x32xbf16>, vector<256x32xf32> -> vector<256x32xf32>
    %14 = arith.addf %7, %13 : vector<256x32xf32>
    %c0_14 = arith.constant 0 : index
    %c2 = arith.constant 2 : index
    %c0_15 = arith.constant 0 : index
    %c0_16 = arith.constant 0 : index
    %15 = vector.load %arg1[%c0_14, %c2, %c0_15, %c0_16] : memref<2x18x8x12xf32, #tpu.memory_space<vmem>>, vector<2x16x8x12xf32>
    %16 = vector.shape_cast %15 : vector<2x16x8x12xf32> to vector<256x12xf32>
    %17 = arith.truncf %16 : vector<256x12xf32> to vector<256x12xbf16>
    %c2_17 = arith.constant 2 : index
    %c0_18 = arith.constant 0 : index
    %c0_19 = arith.constant 0 : index
    %18 = vector.load %arg2[%c2_17, %c0_18, %c0_19] : memref<3x12x32xbf16, #tpu.memory_space<vmem>>, vector<1x12x32xbf16>
    %19 = vector.shape_cast %18 : vector<1x12x32xbf16> to vector<12x32xbf16>
    %cst_20 = arith.constant dense<0.000000e+00> : vector<256x32xf32>
    %20 = tpu.matmul %17, %19, %cst_20 {dimension_numbers = #tpu.dot_dimension_numbers<[1], [0], [0], [1], [0, 0, 1, 1], [], []>} : vector<256x12xbf16>, vector<12x32xbf16>, vector<256x32xf32> -> vector<256x32xf32>
    %21 = arith.addf %14, %20 : vector<256x32xf32>
    %c0_21 = arith.constant 0 : index
    %c0_22 = arith.constant 0 : index
    %22 = vector.load %arg3[%c0_21, %c0_22] : memref<1x32xf32, #tpu.memory_space<vmem>>, vector<1x32xf32>
    %23 = vector.broadcast %22 : vector<1x32xf32> to vector<256x32xf32>
    %24 = arith.addf %21, %23 : vector<256x32xf32>
    %cst_23 = arith.constant dense<0.000000e+00> : vector<32xf32>
    %25 = vector.multi_reduction <add>, %24, %cst_23 [0] : vector<256x32xf32> to vector<32xf32>
    %26 = vector.shape_cast %25 : vector<32xf32> to vector<1x32xf32>
    %cst_24 = arith.constant 2.560000e+02 : f32
    %27 = vector.broadcast %cst_24 : f32 to vector<1x32xf32>
    %28 = arith.divf %26, %27 : vector<1x32xf32>
    %29 = vector.broadcast %28 : vector<1x32xf32> to vector<256x32xf32>
    %30 = arith.subf %24, %29 : vector<256x32xf32>
    %31 = arith.mulf %30, %30 : vector<256x32xf32>
    %cst_25 = arith.constant dense<0.000000e+00> : vector<32xf32>
    %32 = vector.multi_reduction <add>, %31, %cst_25 [0] : vector<256x32xf32> to vector<32xf32>
    %33 = vector.shape_cast %32 : vector<32xf32> to vector<1x32xf32>
    %cst_26 = arith.constant 2.560000e+02 : f32
    %34 = vector.broadcast %cst_26 : f32 to vector<1x32xf32>
    %35 = arith.divf %33, %34 : vector<1x32xf32>
    %36 = vector.broadcast %28 : vector<1x32xf32> to vector<256x32xf32>
    %37 = arith.subf %24, %36 : vector<256x32xf32>
    %cst_27 = arith.constant 9.99999974E-6 : f32
    %38 = vector.broadcast %cst_27 : f32 to vector<1x32xf32>
    %39 = arith.addf %35, %38 : vector<1x32xf32>
    %40 = math.rsqrt %39 : vector<1x32xf32>
    %41 = vector.broadcast %40 : vector<1x32xf32> to vector<256x32xf32>
    %42 = arith.mulf %37, %41 : vector<256x32xf32>
    %c0_28 = arith.constant 0 : index
    %c0_29 = arith.constant 0 : index
    %43 = vector.load %arg4[%c0_28, %c0_29] : memref<1x32xf32, #tpu.memory_space<vmem>>, vector<1x32xf32>
    %44 = vector.broadcast %43 : vector<1x32xf32> to vector<256x32xf32>
    %45 = arith.mulf %42, %44 : vector<256x32xf32>
    %c0_30 = arith.constant 0 : index
    %c0_31 = arith.constant 0 : index
    %46 = vector.load %arg5[%c0_30, %c0_31] : memref<1x32xf32, #tpu.memory_space<vmem>>, vector<1x32xf32>
    %47 = vector.broadcast %46 : vector<1x32xf32> to vector<256x32xf32>
    %48 = arith.addf %45, %47 : vector<256x32xf32>
    %cst_32 = arith.constant 0.000000e+00 : f32
    %49 = vector.broadcast %cst_32 : f32 to vector<256x32xf32>
    %50 = arith.maximumf %48, %49 : vector<256x32xf32>
    %51 = vector.shape_cast %50 : vector<256x32xf32> to vector<2x16x8x32xf32>
    %c0_33 = arith.constant 0 : index
    %c0_34 = arith.constant 0 : index
    %c0_35 = arith.constant 0 : index
    %c0_36 = arith.constant 0 : index
    %52 = vector.load %arg6[%c0_33, %c0_34, %c0_35, %c0_36] : memref<2x16x8x32xf32, #tpu.memory_space<vmem>>, vector<2x16x8x32xf32>
    tpu.vector_store %arg6[%c0_33, %c0_34, %c0_35, %c0_36], %51 {strides = array<i32>} : memref<2x16x8x32xf32, #tpu.memory_space<vmem>>, vector<2x16x8x32xf32>,
    return
  }
  func.func @transform_0(%arg0: i32) -> (i32, i32, i32, i32) {
    %c0_i32 = arith.constant 0 : i32
    %c0_i32_0 = arith.constant 0 : i32
    %c0_i32_1 = arith.constant 0 : i32
    %c0_i32_2 = arith.constant 0 : i32
    %c0_i32_3 = arith.constant 0 : i32
    return %c0_i32, %c0_i32_0, %c0_i32_1, %c0_i32_2 : i32, i32, i32, i32
  }
  func.func @transform_1(%arg0: i32) -> (i32, i32, i32) {
    %c0_i32 = arith.constant 0 : i32
    %c0_i32_0 = arith.constant 0 : i32
    %c0_i32_1 = arith.constant 0 : i32
    %c0_i32_2 = arith.constant 0 : i32
    return %c0_i32, %c0_i32_0, %c0_i32_1 : i32, i32, i32
  }
  func.func @transform_2(%arg0: i32) -> (i32, i32) {
    %c0_i32 = arith.constant 0 : i32
    %c0_i32_0 = arith.constant 0 : i32
    %c0_i32_1 = arith.constant 0 : i32
    return %c0_i32, %c0_i32_0 : i32, i32
  }
  func.func @transform_3(%arg0: i32) -> (i32, i32) {
    %c0_i32 = arith.constant 0 : i32
    %c0_i32_0 = arith.constant 0 : i32
    %c0_i32_1 = arith.constant 0 : i32
    return %c0_i32, %c0_i32_0 : i32, i32
  }
  func.func @transform_4(%arg0: i32) -> (i32, i32) {
    %c0_i32 = arith.constant 0 : i32
    %c0_i32_0 = arith.constant 0 : i32
    %c0_i32_1 = arith.constant 0 : i32
    return %c0_i32, %c0_i32_0 : i32, i32
  }
  func.func @transform_5(%arg0: i32) -> (i32, i32, i32, i32) {
    %c0_i32 = arith.constant 0 : i32
    %c0_i32_0 = arith.constant 0 : i32
    %c0_i32_1 = arith.constant 0 : i32
    %c0_i32_2 = arith.constant 0 : i32
    %c0_i32_3 = arith.constant 0 : i32
    return %c0_i32, %c0_i32_0, %c0_i32_1, %c0_i32_2 : i32, i32, i32, i32
  }
}

</mosaic_0001>

<llo_original>
// kernel: tpu_custom_call.1
$region0: #{tpu_custom_call.1}
  #allocation0 [shape = 'u32[]', space=smem, size = 0x4, offset = 0x4, fixed_abs, tag = 'smem constant byte address 0x4 - core index']
  #allocation1 [shape = 'u32[144,128]{1,0:T(1,128)}', space=vmem, size = 0x12000, scoped, tag = 'internal scratch']
  %s0 = inlined_call_operand.vmem [shape: f32[2,18,8,12], index: 0, kind: input, shape index: {}]
  %s1 = inlined_call_operand.vmem [shape: bf16[3,12,32], index: 1, kind: input, shape index: {}]
  %s2 = inlined_call_operand.vmem [shape: f32[1,32], index: 2, kind: input, shape index: {}]
  %s3 = inlined_call_operand.vmem [shape: f32[1,32], index: 3, kind: input, shape index: {}]
  %s4 = inlined_call_operand.vmem [shape: f32[1,32], index: 4, kind: input, shape index: {}]
  %s5 = inlined_call_operand.hbm [shape: f32[2,16,8,32], index: 5, kind: output, shape index: {}]
  %s6 = sld [smem:[#allocation0]]
  $region30: #{tpu_custom_call.1} parent=0
    _
  %s8 = ssub.s32 1, %s6
  %s9 = scalar_select 0, %s8, %s6
  $region1: #{tpu_custom_call.1} parent=0
    #allocation2 [shape = 'u8[131072]{0}', space=vmem, size = 0x20000, scoped, tag = 'output window, operand 0, single buffered']
    #allocation3 [shape = 's32[1]{0}', space=sflag, size = 0x4, scoped, tag = 'scoped memory for tpu_custom_call.1']
    %10 = vsyncpa [#allocation3], 0
    // Predicated region
    $region2: #{tpu_custom_call.1} parent=1 // pred_check
      _
    $region3: #{tpu_custom_call.1} parent=1 // pred_check_branch
      %12 = sbr.rel (0) target = $region5
    $region4: #{tpu_custom_call.1} parent=1 // pred_region
      _
    $region5: #{tpu_custom_call.1} parent=1 // pred_fallthru
      _
    // Predicated region
    $region6: #{tpu_custom_call.1} parent=1 // pred_check
      _
    $region7: #{tpu_custom_call.1} parent=1 // pred_check_branch
      %14 = sbr.rel (0) target = $region9
    $region8: #{tpu_custom_call.1} parent=1 // pred_region
      _
    $region9: #{tpu_custom_call.1} parent=1 // pred_fallthru
      _
    // Predicated region
    $region10: #{tpu_custom_call.1} parent=1 // pred_check
      _
    $region11: #{tpu_custom_call.1} parent=1 // pred_check_branch
      %16 = sbr.rel (0) target = $region13
    $region12: #{tpu_custom_call.1} parent=1 // pred_region
      _
    $region13: #{tpu_custom_call.1} parent=1 // pred_fallthru
      _
    // Predicated region
    $region14: #{tpu_custom_call.1} parent=1 // pred_check
      _
    $region15: #{tpu_custom_call.1} parent=1 // pred_check_branch
      %18 = sbr.rel (0) target = $region17
    $region16: #{tpu_custom_call.1} parent=1 // pred_region
      _
    $region17: #{tpu_custom_call.1} parent=1 // pred_fallthru
      _
    // Predicated region
    $region18: #{tpu_custom_call.1} parent=1 // pred_check
      _
    $region19: #{tpu_custom_call.1} parent=1 // pred_check_branch
      %20 = sbr.rel (0) target = $region21
    $region20: #{tpu_custom_call.1} parent=1 // pred_region
      _
    $region21: #{tpu_custom_call.1} parent=1 // pred_fallthru
      _
    %v22 = vld [vmem:[%s0] sm:$0xff]
    %v23 = vld [vmem:[%s0 + $0x8] sm:$0xff]
    %v24 = vld [vmem:[%s0 + $0x10] sm:$0xff]
    %v25 = vld [vmem:[%s0 + $0x18] sm:$0xff]
    %v26 = vld [vmem:[%s0 + $0x20] sm:$0xff]
    %v27 = vld [vmem:[%s0 + $0x28] sm:$0xff]
    %v28 = vld [vmem:[%s0 + $0x30] sm:$0xff]
    %v29 = vld [vmem:[%s0 + $0x38] sm:$0xff]
    %v30 = vld [vmem:[%s0 + $0x40] sm:$0xff]
    %v31 = vld [vmem:[%s0 + $0x48] sm:$0xff]
    %v32 = vld [vmem:[%s0 + $0x50] sm:$0xff]
    %v33 = vld [vmem:[%s0 + $0x58] sm:$0xff]
    %v34 = vld [vmem:[%s0 + $0x60] sm:$0xff]
    %v35 = vld [vmem:[%s0 + $0x68] sm:$0xff]
    %v36 = vld [vmem:[%s0 + $0x70] sm:$0xff]
    %v37 = vld [vmem:[%s0 + $0x78] sm:$0xff]
    %v38 = vld [vmem:[%s0 + $0x90] sm:$0xff]
    %v39 = vld [vmem:[%s0 + $0x98] sm:$0xff]
    %v40 = vld [vmem:[%s0 + $0xa0] sm:$0xff]
    %v41 = vld [vmem:[%s0 + $0xa8] sm:$0xff]
    %v42 = vld [vmem:[%s0 + $0xb0] sm:$0xff]
    %v43 = vld [vmem:[%s0 + $0xb8] sm:$0xff]
    %v44 = vld [vmem:[%s0 + $0xc0] sm:$0xff]
    %v45 = vld [vmem:[%s0 + $0xc8] sm:$0xff]
    %v46 = vld [vmem:[%s0 + $0xd0] sm:$0xff]
    %v47 = vld [vmem:[%s0 + $0xd8] sm:$0xff]
    %v48 = vld [vmem:[%s0 + $0xe0] sm:$0xff]
    %v49 = vld [vmem:[%s0 + $0xe8] sm:$0xff]
    %v50 = vld [vmem:[%s0 + $0xf0] sm:$0xff]
    %v51 = vld [vmem:[%s0 + $0xf8] sm:$0xff]
    %v52 = vld [vmem:[%s0 + $0x100] sm:$0xff]
    %v53 = vld [vmem:[%s0 + $0x108] sm:$0xff]
    %v54 = vpack.c.bf16 %v23, %v22
    %v55 = vpack.c.bf16 %v25, %v24
    %v56 = vpack.c.bf16 %v27, %v26
    %v57 = vpack.c.bf16 %v29, %v28
    %v58 = vpack.c.bf16 %v31, %v30
    %v59 = vpack.c.bf16 %v33, %v32
    %v60 = vpack.c.bf16 %v35, %v34
    %v61 = vpack.c.bf16 %v37, %v36
    %v62 = vpack.c.bf16 %v39, %v38
    %v63 = vpack.c.bf16 %v41, %v40
    %v64 = vpack.c.bf16 %v43, %v42
    %v65 = vpack.c.bf16 %v45, %v44
    %v66 = vpack.c.bf16 %v47, %v46
    %v67 = vpack.c.bf16 %v49, %v48
    %v68 = vpack.c.bf16 %v51, %v50
    %v69 = vpack.c.bf16 %v53, %v52
    %v70 = vld [vmem:[%s1] sm:$0xf]
    %v71 = vld [vmem:[%s1 + $0x4] sm:$0x3]
    %s72 = scalar_lea.vmem %s0, 8
    %v73 = vld [vmem:[%s72] sm:$0xff]
    %v74 = vld [vmem:[%s72 + $0x8] sm:$0xff]
    %v75 = vld [vmem:[%s72 + $0x10] sm:$0xff]
    %v76 = vld [vmem:[%s72 + $0x18] sm:$0xff]
    %v77 = vld [vmem:[%s72 + $0x20] sm:$0xff]
    %v78 = vld [vmem:[%s72 + $0x28] sm:$0xff]
    %v79 = vld [vmem:[%s72 + $0x30] sm:$0xff]
    %v80 = vld [vmem:[%s72 + $0x38] sm:$0xff]
    %v81 = vld [vmem:[%s72 + $0x40] sm:$0xff]
    %v82 = vld [vmem:[%s72 + $0x48] sm:$0xff]
    %v83 = vld [vmem:[%s72 + $0x50] sm:$0xff]
    %v84 = vld [vmem:[%s72 + $0x58] sm:$0xff]
    %v85 = vld [vmem:[%s72 + $0x60] sm:$0xff]
    %v86 = vld [vmem:[%s72 + $0x68] sm:$0xff]
    %v87 = vld [vmem:[%s72 + $0x70] sm:$0xff]
    %v88 = vld [vmem:[%s72 + $0x78] sm:$0xff]
    %v89 = vld [vmem:[%s72 + $0x90] sm:$0xff]
    %v90 = vld [vmem:[%s72 + $0x98] sm:$0xff]
    %v91 = vld [vmem:[%s72 + $0xa0] sm:$0xff]
    %v92 = vld [vmem:[%s72 + $0xa8] sm:$0xff]
    %v93 = vld [vmem:[%s72 + $0xb0] sm:$0xff]
    %v94 = vld [vmem:[%s72 + $0xb8] sm:$0xff]
    %v95 = vld [vmem:[%s72 + $0xc0] sm:$0xff]
    %v96 = vld [vmem:[%s72 + $0xc8] sm:$0xff]
    %v97 = vld [vmem:[%s72 + $0xd0] sm:$0xff]
    %v98 = vld [vmem:[%s72 + $0xd8] sm:$0xff]
    %v99 = vld [vmem:[%s72 + $0xe0] sm:$0xff]
    %v100 = vld [vmem:[%s72 + $0xe8] sm:$0xff]
    %v101 = vld [vmem:[%s72 + $0xf0] sm:$0xff]
    %v102 = vld [vmem:[%s72 + $0xf8] sm:$0xff]
    %v103 = vld [vmem:[%s72 + $0x100] sm:$0xff]
    %v104 = vld [vmem:[%s72 + $0x108] sm:$0xff]
    %v105 = vpack.c.bf16 %v74, %v73
    %v106 = vpack.c.bf16 %v76, %v75
    %v107 = vpack.c.bf16 %v78, %v77
    %v108 = vpack.c.bf16 %v80, %v79
    %v109 = vpack.c.bf16 %v82, %v81
    %v110 = vpack.c.bf16 %v84, %v83
    %v111 = vpack.c.bf16 %v86, %v85
    %v112 = vpack.c.bf16 %v88, %v87
    %v113 = vpack.c.bf16 %v90, %v89
    %v114 = vpack.c.bf16 %v92, %v91
    %v115 = vpack.c.bf16 %v94, %v93
    %v116 = vpack.c.bf16 %v96, %v95
    %v117 = vpack.c.bf16 %v98, %v97
    %v118 = vpack.c.bf16 %v100, %v99
    %v119 = vpack.c.bf16 %v102, %v101
    %v120 = vpack.c.bf16 %v104, %v103
    %s121 = scalar_lea.vmem %s1, 8
    %v122 = vld [vmem:[%s121] sm:$0xf]
    %v123 = vld [vmem:[%s121 + $0x4] sm:$0x3]
    %v126 = vunpack.c.l.b16 %v122
    %v127 = vunpack.c.l.b16 %v123
    %v128 = vpack.c.b16 %v127, %v126
    %vm129 = vcmask 97280
    %v131 = vsel %vm129, %v105, 0
    %v134 = vsel %vm129, %v106, 0
    %v137 = vsel %vm129, %v107, 0
    %v140 = vsel %vm129, %v108, 0
    %v143 = vsel %vm129, %v109, 0
    %v146 = vsel %vm129, %v110, 0
    %v149 = vsel %vm129, %v111, 0
    %v152 = vsel %vm129, %v112, 0
    %v155 = vsel %vm129, %v113, 0
    %v158 = vsel %vm129, %v114, 0
    %v161 = vsel %vm129, %v115, 0
    %v164 = vsel %vm129, %v116, 0
    %v167 = vsel %vm129, %v117, 0
    %v170 = vsel %vm129, %v118, 0
    %v173 = vsel %vm129, %v119, 0
    %v176 = vsel %vm129, %v120, 0
    %vm178 = vcmask 1045504
    %v180 = vsel %vm178, %v128, 0
    %182 = vmatprep.subr.bf16.mxu0 0
    %183 = vmatpush1.bf16.msra.mxu0 %v180
    %184 = vmatprep.subr.bf16.mxu0 0
    %185 = vmatpush1.bf16.msra.mxu0 0
    %186 = vmatprep.subr.bf16.mxu0 0
    %187 = vmatpush1.bf16.msra.mxu0 0
    %188 = vmatprep.subr.bf16.mxu0 0
    %189 = vmatpush1.bf16.msra.mxu0 0
    %190 = vmatprep.subr.bf16.mxu0 0
    %191 = vmatpush1.bf16.msra.mxu0 0
    %192 = vmatprep.subr.bf16.mxu0 0
    %193 = vmatpush1.bf16.msra.mxu0 0
    %194 = vmatprep.subr.bf16.mxu0 0
    %195 = vmatpush1.bf16.msra.mxu0 0
    %196 = vmatprep.subr.bf16.mxu0 0
    %197 = vmatpush1.bf16.msra.mxu0 0
    %198 = vmatprep.subr.bf16.mxu0 0
    %199 = vmatpush1.bf16.msra.mxu0 0
    %200 = vmatprep.subr.bf16.mxu0 0
    %201 = vmatpush1.bf16.msra.mxu0 0
    %202 = vmatprep.subr.bf16.mxu0 0
    %203 = vmatpush1.bf16.msra.mxu0 0
    %204 = vmatprep.subr.bf16.mxu0 0
    %205 = vmatpush1.bf16.msra.mxu0 0
    %206 = vmatprep.subr.bf16.mxu0 0
    %207 = vmatpush1.bf16.msra.mxu0 0
    %208 = vmatprep.subr.bf16.mxu0 0
    %209 = vmatpush1.bf16.msra.mxu0 0
    %210 = vmatprep.subr.bf16.mxu0 0
    %211 = vmatpush1.bf16.msra.mxu0 0
    %212 = vmatprep.subr.bf16.mxu0 0
    %213 = vmatpush1.bf16.msra.mxu0 0
    %214 = vmatprep.mubr.bf16.mxu0 0
    %215 = vmatmul.mubr.bf16.gmra.mrb[0].mxu0 %v131
    %v216 = vpop.f32.mrb[0].mxu0
    %v217 = vadd.f32 0.0, %v216
    %v218 = vpop.f32.mrb[0].mxu0
    %v219 = vpop.f32.mrb[0].mxu0
    %v220 = vadd.f32 0.0, %v219
    %v221 = vpop.f32.mrb[0].mxu0
    %222 = vmatprep.mubr.bf16.mxu0 0
    %223 = vmatmul.mubr.bf16.gmra.mrb[0].mxu0 %v134
    %v224 = vpop.f32.mrb[0].mxu0
    %v225 = vadd.f32 0.0, %v224
    %v226 = vpop.f32.mrb[0].mxu0
    %v227 = vpop.f32.mrb[0].mxu0
    %v228 = vadd.f32 0.0, %v227
    %v229 = vpop.f32.mrb[0].mxu0
    %230 = vmatprep.mubr.bf16.mxu0 0
    %231 = vmatmul.mubr.bf16.gmra.mrb[0].mxu0 %v137
    %v232 = vpop.f32.mrb[0].mxu0
    %v233 = vadd.f32 0.0, %v232
    %v234 = vpop.f32.mrb[0].mxu0
    %v235 = vpop.f32.mrb[0].mxu0
    %v236 = vadd.f32 0.0, %v235
    %v237 = vpop.f32.mrb[0].mxu0
    %238 = vmatprep.mubr.bf16.mxu0 0
    %239 = vmatmul.mubr.bf16.gmra.mrb[0].mxu0 %v140
    %v240 = vpop.f32.mrb[0].mxu0
    %v241 = vadd.f32 0.0, %v240
    %v242 = vpop.f32.mrb[0].mxu0
    %v243 = vpop.f32.mrb[0].mxu0
    %v244 = vadd.f32 0.0, %v243
    %v245 = vpop.f32.mrb[0].mxu0
    %246 = vmatprep.mubr.bf16.mxu0 0
    %247 = vmatmul.mubr.bf16.gmra.mrb[0].mxu0 %v143
    %v248 = vpop.f32.mrb[0].mxu0
    %v249 = vadd.f32 0.0, %v248
    %v250 = vpop.f32.mrb[0].mxu0
    %v251 = vpop.f32.mrb[0].mxu0
    %v252 = vadd.f32 0.0, %v251
    %v253 = vpop.f32.mrb[0].mxu0
    %254 = vmatprep.mubr.bf16.mxu0 0
    %255 = vmatmul.mubr.bf16.gmra.mrb[0].mxu0 %v146
    %v256 = vpop.f32.mrb[0].mxu0
    %v257 = vadd.f32 0.0, %v256
    %v258 = vpop.f32.mrb[0].mxu0
    %v259 = vpop.f32.mrb[0].mxu0
    %v260 = vadd.f32 0.0, %v259
    %v261 = vpop.f32.mrb[0].mxu0
    %262 = vmatprep.mubr.bf16.mxu0 0
    %263 = vmatmul.mubr.bf16.gmra.mrb[0].mxu0 %v149
    %v264 = vpop.f32.mrb[0].mxu0
    %v265 = vadd.f32 0.0, %v264
    %v266 = vpop.f32.mrb[0].mxu0
    %v267 = vpop.f32.mrb[0].mxu0
    %v268 = vadd.f32 0.0, %v267
    %v269 = vpop.f32.mrb[0].mxu0
    %270 = vmatprep.mubr.bf16.mxu0 0
    %271 = vmatmul.mubr.bf16.gmra.mrb[0].mxu0 %v152
    %v272 = vpop.f32.mrb[0].mxu0
    %v273 = vadd.f32 0.0, %v272
    %v274 = vpop.f32.mrb[0].mxu0
    %v275 = vpop.f32.mrb[0].mxu0
    %v276 = vadd.f32 0.0, %v275
    %v277 = vpop.f32.mrb[0].mxu0
    %278 = vmatprep.mubr.bf16.mxu0 0
    %279 = vmatmul.mubr.bf16.gmra.mrb[0].mxu0 %v155
    %v280 = vpop.f32.mrb[0].mxu0
    %v281 = vadd.f32 0.0, %v280
    %v282 = vpop.f32.mrb[0].mxu0
    %v283 = vpop.f32.mrb[0].mxu0
    %v284 = vadd.f32 0.0, %v283
    %v285 = vpop.f32.mrb[0].mxu0
    %286 = vmatprep.mubr.bf16.mxu0 0
    %287 = vmatmul.mubr.bf16.gmra.mrb[0].mxu0 %v158
    %v288 = vpop.f32.mrb[0].mxu0
    %v289 = vadd.f32 0.0, %v288
    %v290 = vpop.f32.mrb[0].mxu0
    %v291 = vpop.f32.mrb[0].mxu0
    %v292 = vadd.f32 0.0, %v291
    %v293 = vpop.f32.mrb[0].mxu0
    %294 = vmatprep.mubr.bf16.mxu0 0
    %295 = vmatmul.mubr.bf16.gmra.mrb[0].mxu0 %v161
    %v296 = vpop.f32.mrb[0].mxu0
    %v297 = vadd.f32 0.0, %v296
    %v298 = vpop.f32.mrb[0].mxu0
    %v299 = vpop.f32.mrb[0].mxu0
    %v300 = vadd.f32 0.0, %v299
    %v301 = vpop.f32.mrb[0].mxu0
    %302 = vmatprep.mubr.bf16.mxu0 0
    %303 = vmatmul.mubr.bf16.gmra.mrb[0].mxu0 %v164
    %v304 = vpop.f32.mrb[0].mxu0
    %v305 = vadd.f32 0.0, %v304
    %v306 = vpop.f32.mrb[0].mxu0
    %v307 = vpop.f32.mrb[0].mxu0
    %v308 = vadd.f32 0.0, %v307
    %v309 = vpop.f32.mrb[0].mxu0
    %310 = vmatprep.mubr.bf16.mxu0 0
    %311 = vmatmul.mubr.bf16.gmra.mrb[0].mxu0 %v167
    %v312 = vpop.f32.mrb[0].mxu0
    %v313 = vadd.f32 0.0, %v312
    %v314 = vpop.f32.mrb[0].mxu0
    %v315 = vpop.f32.mrb[0].mxu0
    %v316 = vadd.f32 0.0, %v315
    %v317 = vpop.f32.mrb[0].mxu0
    %318 = vmatprep.mubr.bf16.mxu0 0
    %319 = vmatmul.mubr.bf16.gmra.mrb[0].mxu0 %v170
    %v320 = vpop.f32.mrb[0].mxu0
    %v321 = vadd.f32 0.0, %v320
    %v322 = vpop.f32.mrb[0].mxu0
    %v323 = vpop.f32.mrb[0].mxu0
    %v324 = vadd.f32 0.0, %v323
    %v325 = vpop.f32.mrb[0].mxu0
    %326 = vmatprep.mubr.bf16.mxu0 0
    %327 = vmatmul.mubr.bf16.gmra.mrb[0].mxu0 %v173
    %v328 = vpop.f32.mrb[0].mxu0
    %v329 = vadd.f32 0.0, %v328
    %v330 = vpop.f32.mrb[0].mxu0
    %v331 = vpop.f32.mrb[0].mxu0
    %v332 = vadd.f32 0.0, %v331
    %v333 = vpop.f32.mrb[0].mxu0
    %334 = vmatprep.mubr.bf16.mxu0 0
    %335 = vmatmul.mubr.bf16.gmra.mrb[0].mxu0 %v176
    %v336 = vpop.f32.mrb[0].mxu0
    %v337 = vadd.f32 0.0, %v336
    %v338 = vpop.f32.mrb[0].mxu0
    %v339 = vpop.f32.mrb[0].mxu0
    %v340 = vadd.f32 0.0, %v339
    %v341 = vpop.f32.mrb[0].mxu0
    %342 = vdwg.mxu0
    %v345 = vunpack.c.l.b16 %v70
    %v346 = vunpack.c.l.b16 %v71
    %v347 = vpack.c.b16 %v346, %v345
    %v349 = vsel %vm129, %v54, 0
    %v352 = vsel %vm129, %v55, 0
    %v355 = vsel %vm129, %v56, 0
    %v358 = vsel %vm129, %v57, 0
    %v361 = vsel %vm129, %v58, 0
    %v364 = vsel %vm129, %v59, 0
    %v367 = vsel %vm129, %v60, 0
    %v370 = vsel %vm129, %v61, 0
    %v373 = vsel %vm129, %v62, 0
    %v376 = vsel %vm129, %v63, 0
    %v379 = vsel %vm129, %v64, 0
    %v382 = vsel %vm129, %v65, 0
    %v385 = vsel %vm129, %v66, 0
    %v388 = vsel %vm129, %v67, 0
    %v391 = vsel %vm129, %v68, 0
    %v394 = vsel %vm129, %v69, 0
    %v397 = vsel %vm178, %v347, 0
    %399 = vmatprep.subr.bf16.mxu0 0
    %400 = vmatpush1.bf16.msra.mxu0 %v397
    %401 = vmatprep.subr.bf16.mxu0 0
    %402 = vmatpush1.bf16.msra.mxu0 0
    %403 = vmatprep.subr.bf16.mxu0 0
    %404 = vmatpush1.bf16.msra.mxu0 0
    %405 = vmatprep.subr.bf16.mxu0 0
    %406 = vmatpush1.bf16.msra.mxu0 0
    %407 = vmatprep.subr.bf16.mxu0 0
    %408 = vmatpush1.bf16.msra.mxu0 0
    %409 = vmatprep.subr.bf16.mxu0 0
    %410 = vmatpush1.bf16.msra.mxu0 0
    %411 = vmatprep.subr.bf16.mxu0 0
    %412 = vmatpush1.bf16.msra.mxu0 0
    %413 = vmatprep.subr.bf16.mxu0 0
    %414 = vmatpush1.bf16.msra.mxu0 0
    %415 = vmatprep.subr.bf16.mxu0 0
    %416 = vmatpush1.bf16.msra.mxu0 0
    %417 = vmatprep.subr.bf16.mxu0 0
    %418 = vmatpush1.bf16.msra.mxu0 0
    %419 = vmatprep.subr.bf16.mxu0 0
    %420 = vmatpush1.bf16.msra.mxu0 0
    %421 = vmatprep.subr.bf16.mxu0 0
    %422 = vmatpush1.bf16.msra.mxu0 0
    %423 = vmatprep.subr.bf16.mxu0 0
    %424 = vmatpush1.bf16.msra.mxu0 0
    %425 = vmatprep.subr.bf16.mxu0 0
    %426 = vmatpush1.bf16.msra.mxu0 0
    %427 = vmatprep.subr.bf16.mxu0 0
    %428 = vmatpush1.bf16.msra.mxu0 0
    %429 = vmatprep.subr.bf16.mxu0 0
    %430 = vmatpush1.bf16.msra.mxu0 0
    %431 = vmatprep.mubr.bf16.mxu0 0
    %432 = vmatmul.mubr.bf16.gmra.mrb[0].mxu0 %v349
    %v433 = vpop.f32.mrb[0].mxu0
    %v434 = vadd.f32 %v217, %v433
    %v435 = vpop.f32.mrb[0].mxu0
    %v436 = vpop.f32.mrb[0].mxu0
    %v437 = vadd.f32 %v220, %v436
    %v438 = vpop.f32.mrb[0].mxu0
    %439 = vmatprep.mubr.bf16.mxu0 0
    %440 = vmatmul.mubr.bf16.gmra.mrb[0].mxu0 %v352
    %v441 = vpop.f32.mrb[0].mxu0
    %v442 = vadd.f32 %v225, %v441
    %v443 = vpop.f32.mrb[0].mxu0
    %v444 = vpop.f32.mrb[0].mxu0
    %v445 = vadd.f32 %v228, %v444
    %v446 = vpop.f32.mrb[0].mxu0
    %447 = vmatprep.mubr.bf16.mxu0 0
    %448 = vmatmul.mubr.bf16.gmra.mrb[0].mxu0 %v355
    %v449 = vpop.f32.mrb[0].mxu0
    %v450 = vadd.f32 %v233, %v449
    %v451 = vpop.f32.mrb[0].mxu0
    %v452 = vpop.f32.mrb[0].mxu0
    %v453 = vadd.f32 %v236, %v452
    %v454 = vpop.f32.mrb[0].mxu0
    %455 = vmatprep.mubr.bf16.mxu0 0
    %456 = vmatmul.mubr.bf16.gmra.mrb[0].mxu0 %v358
    %v457 = vpop.f32.mrb[0].mxu0
    %v458 = vadd.f32 %v241, %v457
    %v459 = vpop.f32.mrb[0].mxu0
    %v460 = vpop.f32.mrb[0].mxu0
    %v461 = vadd.f32 %v244, %v460
    %v462 = vpop.f32.mrb[0].mxu0
    %463 = vmatprep.mubr.bf16.mxu0 0
    %464 = vmatmul.mubr.bf16.gmra.mrb[0].mxu0 %v361
    %v465 = vpop.f32.mrb[0].mxu0
    %v466 = vadd.f32 %v249, %v465
    %v467 = vpop.f32.mrb[0].mxu0
    %v468 = vpop.f32.mrb[0].mxu0
    %v469 = vadd.f32 %v252, %v468
    %v470 = vpop.f32.mrb[0].mxu0
    %471 = vmatprep.mubr.bf16.mxu0 0
    %472 = vmatmul.mubr.bf16.gmra.mrb[0].mxu0 %v364
    %v473 = vpop.f32.mrb[0].mxu0
    %v474 = vadd.f32 %v257, %v473
    %v475 = vpop.f32.mrb[0].mxu0
    %v476 = vpop.f32.mrb[0].mxu0
    %v477 = vadd.f32 %v260, %v476
    %v478 = vpop.f32.mrb[0].mxu0
    %479 = vmatprep.mubr.bf16.mxu0 0
    %480 = vmatmul.mubr.bf16.gmra.mrb[0].mxu0 %v367
    %v481 = vpop.f32.mrb[0].mxu0
    %v482 = vadd.f32 %v265, %v481
    %v483 = vpop.f32.mrb[0].mxu0
    %v484 = vpop.f32.mrb[0].mxu0
    %v485 = vadd.f32 %v268, %v484
    %v486 = vpop.f32.mrb[0].mxu0
    %487 = vmatprep.mubr.bf16.mxu0 0
    %488 = vmatmul.mubr.bf16.gmra.mrb[0].mxu0 %v370
    %v489 = vpop.f32.mrb[0].mxu0
    %v490 = vadd.f32 %v273, %v489
    %v491 = vpop.f32.mrb[0].mxu0
    %v492 = vpop.f32.mrb[0].mxu0
    %v493 = vadd.f32 %v276, %v492
    %v494 = vpop.f32.mrb[0].mxu0
    %495 = vmatprep.mubr.bf16.mxu0 0
    %496 = vmatmul.mubr.bf16.gmra.mrb[0].mxu0 %v373
    %v497 = vpop.f32.mrb[0].mxu0
    %v498 = vadd.f32 %v281, %v497
    %v499 = vpop.f32.mrb[0].mxu0
    %v500 = vpop.f32.mrb[0].mxu0
    %v501 = vadd.f32 %v284, %v500
    %v502 = vpop.f32.mrb[0].mxu0
    %503 = vmatprep.mubr.bf16.mxu0 0
    %504 = vmatmul.mubr.bf16.gmra.mrb[0].mxu0 %v376
    %v505 = vpop.f32.mrb[0].mxu0
    %v506 = vadd.f32 %v289, %v505
    %v507 = vpop.f32.mrb[0].mxu0
    %v508 = vpop.f32.mrb[0].mxu0
    %v509 = vadd.f32 %v292, %v508
    %v510 = vpop.f32.mrb[0].mxu0
    %511 = vmatprep.mubr.bf16.mxu0 0
    %512 = vmatmul.mubr.bf16.gmra.mrb[0].mxu0 %v379
    %v513 = vpop.f32.mrb[0].mxu0
    %v514 = vadd.f32 %v297, %v513
    %v515 = vpop.f32.mrb[0].mxu0
    %v516 = vpop.f32.mrb[0].mxu0
    %v517 = vadd.f32 %v300, %v516
    %v518 = vpop.f32.mrb[0].mxu0
    %519 = vmatprep.mubr.bf16.mxu0 0
    %520 = vmatmul.mubr.bf16.gmra.mrb[0].mxu0 %v382
    %v521 = vpop.f32.mrb[0].mxu0
    %v522 = vadd.f32 %v305, %v521
    %v523 = vpop.f32.mrb[0].mxu0
    %v524 = vpop.f32.mrb[0].mxu0
    %v525 = vadd.f32 %v308, %v524
    %v526 = vpop.f32.mrb[0].mxu0
    %527 = vmatprep.mubr.bf16.mxu0 0
    %528 = vmatmul.mubr.bf16.gmra.mrb[0].mxu0 %v385
    %v529 = vpop.f32.mrb[0].mxu0
    %v530 = vadd.f32 %v313, %v529
    %v531 = vpop.f32.mrb[0].mxu0
    %v532 = vpop.f32.mrb[0].mxu0
    %v533 = vadd.f32 %v316, %v532
    %v534 = vpop.f32.mrb[0].mxu0
    %535 = vmatprep.mubr.bf16.mxu0 0
    %536 = vmatmul.mubr.bf16.gmra.mrb[0].mxu0 %v388
    %v537 = vpop.f32.mrb[0].mxu0
    %v538 = vadd.f32 %v321, %v537
    %v539 = vpop.f32.mrb[0].mxu0
    %v540 = vpop.f32.mrb[0].mxu0
    %v541 = vadd.f32 %v324, %v540
    %v542 = vpop.f32.mrb[0].mxu0
    %543 = vmatprep.mubr.bf16.mxu0 0
    %544 = vmatmul.mubr.bf16.gmra.mrb[0].mxu0 %v391
    %v545 = vpop.f32.mrb[0].mxu0
    %v546 = vadd.f32 %v329, %v545
    %v547 = vpop.f32.mrb[0].mxu0
    %v548 = vpop.f32.mrb[0].mxu0
    %v549 = vadd.f32 %v332, %v548
    %v550 = vpop.f32.mrb[0].mxu0
    %551 = vmatprep.mubr.bf16.mxu0 0
    %552 = vmatmul.mubr.bf16.gmra.mrb[0].mxu0 %v394
    %v553 = vpop.f32.mrb[0].mxu0
    %v554 = vadd.f32 %v337, %v553
    %v555 = vpop.f32.mrb[0].mxu0
    %v556 = vpop.f32.mrb[0].mxu0
    %v557 = vadd.f32 %v340, %v556
    %v558 = vpop.f32.mrb[0].mxu0
    %559 = vdwg.mxu0
    %s560 = scalar_lea.vmem %s0, 16
    %v561 = vld [vmem:[%s560] sm:$0xff]
    %v562 = vld [vmem:[%s560 + $0x8] sm:$0xff]
    %v563 = vld [vmem:[%s560 + $0x10] sm:$0xff]
    %v564 = vld [vmem:[%s560 + $0x18] sm:$0xff]
    %v565 = vld [vmem:[%s560 + $0x20] sm:$0xff]
    %v566 = vld [vmem:[%s560 + $0x28] sm:$0xff]
    %v567 = vld [vmem:[%s560 + $0x30] sm:$0xff]
    %v568 = vld [vmem:[%s560 + $0x38] sm:$0xff]
    %v569 = vld [vmem:[%s560 + $0x40] sm:$0xff]
    %v570 = vld [vmem:[%s560 + $0x48] sm:$0xff]
    %v571 = vld [vmem:[%s560 + $0x50] sm:$0xff]
    %v572 = vld [vmem:[%s560 + $0x58] sm:$0xff]
    %v573 = vld [vmem:[%s560 + $0x60] sm:$0xff]
    %v574 = vld [vmem:[%s560 + $0x68] sm:$0xff]
    %v575 = vld [vmem:[%s560 + $0x70] sm:$0xff]
    %v576 = vld [vmem:[%s560 + $0x78] sm:$0xff]
    %v577 = vld [vmem:[%s560 + $0x90] sm:$0xff]
    %v578 = vld [vmem:[%s560 + $0x98] sm:$0xff]
    %v579 = vld [vmem:[%s560 + $0xa0] sm:$0xff]
    %v580 = vld [vmem:[%s560 + $0xa8] sm:$0xff]
    %v581 = vld [vmem:[%s560 + $0xb0] sm:$0xff]
    %v582 = vld [vmem:[%s560 + $0xb8] sm:$0xff]
    %v583 = vld [vmem:[%s560 + $0xc0] sm:$0xff]
    %v584 = vld [vmem:[%s560 + $0xc8] sm:$0xff]
    %v585 = vld [vmem:[%s560 + $0xd0] sm:$0xff]
    %v586 = vld [vmem:[%s560 + $0xd8] sm:$0xff]
    %v587 = vld [vmem:[%s560 + $0xe0] sm:$0xff]
    %v588 = vld [vmem:[%s560 + $0xe8] sm:$0xff]
    %v589 = vld [vmem:[%s560 + $0xf0] sm:$0xff]
    %v590 = vld [vmem:[%s560 + $0xf8] sm:$0xff]
    %v591 = vld [vmem:[%s560 + $0x100] sm:$0xff]
    %v592 = vld [vmem:[%s560 + $0x108] sm:$0xff]
    %v593 = vpack.c.bf16 %v562, %v561
    %v594 = vpack.c.bf16 %v564, %v563
    %v595 = vpack.c.bf16 %v566, %v565
    %v596 = vpack.c.bf16 %v568, %v567
    %v597 = vpack.c.bf16 %v570, %v569
    %v598 = vpack.c.bf16 %v572, %v571
    %v599 = vpack.c.bf16 %v574, %v573
    %v600 = vpack.c.bf16 %v576, %v575
    %v601 = vpack.c.bf16 %v578, %v577
    %v602 = vpack.c.bf16 %v580, %v579
    %v603 = vpack.c.bf16 %v582, %v581
    %v604 = vpack.c.bf16 %v584, %v583
    %v605 = vpack.c.bf16 %v586, %v585
    %v606 = vpack.c.bf16 %v588, %v587
    %v607 = vpack.c.bf16 %v590, %v589
    %v608 = vpack.c.bf16 %v592, %v591
    %s609 = scalar_lea.vmem %s1, 16
    %v610 = vld [vmem:[%s609] sm:$0xf]
    %v611 = vld [vmem:[%s609 + $0x4] sm:$0x3]
    %v614 = vunpack.c.l.b16 %v610
    %v615 = vunpack.c.l.b16 %v611
    %v616 = vpack.c.b16 %v615, %v614
    %v618 = vsel %vm129, %v593, 0
    %v621 = vsel %vm129, %v594, 0
    %v624 = vsel %vm129, %v595, 0
    %v627 = vsel %vm129, %v596, 0
    %v630 = vsel %vm129, %v597, 0
    %v633 = vsel %vm129, %v598, 0
    %v636 = vsel %vm129, %v599, 0
    %v639 = vsel %vm129, %v600, 0
    %v642 = vsel %vm129, %v601, 0
    %v645 = vsel %vm129, %v602, 0
    %v648 = vsel %vm129, %v603, 0
    %v651 = vsel %vm129, %v604, 0
    %v654 = vsel %vm129, %v605, 0
    %v657 = vsel %vm129, %v606, 0
    %v660 = vsel %vm129, %v607, 0
    %v663 = vsel %vm129, %v608, 0
    %v666 = vsel %vm178, %v616, 0
    %668 = vmatprep.subr.bf16.mxu0 0
    %669 = vmatpush1.bf16.msra.mxu0 %v666
    %670 = vmatprep.subr.bf16.mxu0 0
    %671 = vmatpush1.bf16.msra.mxu0 0
    %672 = vmatprep.subr.bf16.mxu0 0
    %673 = vmatpush1.bf16.msra.mxu0 0
    %674 = vmatprep.subr.bf16.mxu0 0
    %675 = vmatpush1.bf16.msra.mxu0 0
    %676 = vmatprep.subr.bf16.mxu0 0
    %677 = vmatpush1.bf16.msra.mxu0 0
    %678 = vmatprep.subr.bf16.mxu0 0
    %679 = vmatpush1.bf16.msra.mxu0 0
    %680 = vmatprep.subr.bf16.mxu0 0
    %681 = vmatpush1.bf16.msra.mxu0 0
    %682 = vmatprep.subr.bf16.mxu0 0
    %683 = vmatpush1.bf16.msra.mxu0 0
    %684 = vmatprep.subr.bf16.mxu0 0
    %685 = vmatpush1.bf16.msra.mxu0 0
    %686 = vmatprep.subr.bf16.mxu0 0
    %687 = vmatpush1.bf16.msra.mxu0 0
    %688 = vmatprep.subr.bf16.mxu0 0
    %689 = vmatpush1.bf16.msra.mxu0 0
    %690 = vmatprep.subr.bf16.mxu0 0
    %691 = vmatpush1.bf16.msra.mxu0 0
    %692 = vmatprep.subr.bf16.mxu0 0
    %693 = vmatpush1.bf16.msra.mxu0 0
    %694 = vmatprep.subr.bf16.mxu0 0
    %695 = vmatpush1.bf16.msra.mxu0 0
    %696 = vmatprep.subr.bf16.mxu0 0
    %697 = vmatpush1.bf16.msra.mxu0 0
    %698 = vmatprep.subr.bf16.mxu0 0
    %699 = vmatpush1.bf16.msra.mxu0 0
    %700 = vmatprep.mubr.bf16.mxu0 0
    %701 = vmatmul.mubr.bf16.gmra.mrb[0].mxu0 %v618
    %v702 = vpop.f32.mrb[0].mxu0
    %v703 = vadd.f32 0.0, %v702
    %v704 = vpop.f32.mrb[0].mxu0
    %v705 = vpop.f32.mrb[0].mxu0
    %v706 = vadd.f32 0.0, %v705
    %v707 = vpop.f32.mrb[0].mxu0
    %708 = vmatprep.mubr.bf16.mxu0 0
    %709 = vmatmul.mubr.bf16.gmra.mrb[0].mxu0 %v621
    %v710 = vpop.f32.mrb[0].mxu0
    %v711 = vadd.f32 0.0, %v710
    %v712 = vpop.f32.mrb[0].mxu0
    %v713 = vpop.f32.mrb[0].mxu0
    %v714 = vadd.f32 0.0, %v713
    %v715 = vpop.f32.mrb[0].mxu0
    %716 = vmatprep.mubr.bf16.mxu0 0
    %717 = vmatmul.mubr.bf16.gmra.mrb[0].mxu0 %v624
    %v718 = vpop.f32.mrb[0].mxu0
    %v719 = vadd.f32 0.0, %v718
    %v720 = vpop.f32.mrb[0].mxu0
    %v721 = vpop.f32.mrb[0].mxu0
    %v722 = vadd.f32 0.0, %v721
    %v723 = vpop.f32.mrb[0].mxu0
    %724 = vmatprep.mubr.bf16.mxu0 0
    %725 = vmatmul.mubr.bf16.gmra.mrb[0].mxu0 %v627
    %v726 = vpop.f32.mrb[0].mxu0
    %v727 = vadd.f32 0.0, %v726
    %v728 = vpop.f32.mrb[0].mxu0
    %v729 = vpop.f32.mrb[0].mxu0
    %v730 = vadd.f32 0.0, %v729
    %v731 = vpop.f32.mrb[0].mxu0
    %732 = vmatprep.mubr.bf16.mxu0 0
    %733 = vmatmul.mubr.bf16.gmra.mrb[0].mxu0 %v630
    %v734 = vpop.f32.mrb[0].mxu0
    %v735 = vadd.f32 0.0, %v734
    %v736 = vpop.f32.mrb[0].mxu0
    %v737 = vpop.f32.mrb[0].mxu0
    %v738 = vadd.f32 0.0, %v737
    %v739 = vpop.f32.mrb[0].mxu0
    %740 = vmatprep.mubr.bf16.mxu0 0
    %741 = vmatmul.mubr.bf16.gmra.mrb[0].mxu0 %v633
    %v742 = vpop.f32.mrb[0].mxu0
    %v743 = vadd.f32 0.0, %v742
    %v744 = vpop.f32.mrb[0].mxu0
    %v745 = vpop.f32.mrb[0].mxu0
    %v746 = vadd.f32 0.0, %v745
    %v747 = vpop.f32.mrb[0].mxu0
    %748 = vmatprep.mubr.bf16.mxu0 0
    %749 = vmatmul.mubr.bf16.gmra.mrb[0].mxu0 %v636
    %v750 = vpop.f32.mrb[0].mxu0
    %v751 = vadd.f32 0.0, %v750
    %v752 = vpop.f32.mrb[0].mxu0
    %v753 = vpop.f32.mrb[0].mxu0
    %v754 = vadd.f32 0.0, %v753
    %v755 = vpop.f32.mrb[0].mxu0
    %756 = vmatprep.mubr.bf16.mxu0 0
    %757 = vmatmul.mubr.bf16.gmra.mrb[0].mxu0 %v639
    %v758 = vpop.f32.mrb[0].mxu0
    %v759 = vadd.f32 0.0, %v758
    %v760 = vpop.f32.mrb[0].mxu0
    %v761 = vpop.f32.mrb[0].mxu0
    %v762 = vadd.f32 0.0, %v761
    %v763 = vpop.f32.mrb[0].mxu0
    %764 = vmatprep.mubr.bf16.mxu0 0
    %765 = vmatmul.mubr.bf16.gmra.mrb[0].mxu0 %v642
    %v766 = vpop.f32.mrb[0].mxu0
    %v767 = vadd.f32 0.0, %v766
    %v768 = vpop.f32.mrb[0].mxu0
    %v769 = vpop.f32.mrb[0].mxu0
    %v770 = vadd.f32 0.0, %v769
    %v771 = vpop.f32.mrb[0].mxu0
    %772 = vmatprep.mubr.bf16.mxu0 0
    %773 = vmatmul.mubr.bf16.gmra.mrb[0].mxu0 %v645
    %v774 = vpop.f32.mrb[0].mxu0
    %v775 = vadd.f32 0.0, %v774
    %v776 = vpop.f32.mrb[0].mxu0
    %v777 = vpop.f32.mrb[0].mxu0
    %v778 = vadd.f32 0.0, %v777
    %v779 = vpop.f32.mrb[0].mxu0
    %780 = vmatprep.mubr.bf16.mxu0 0
    %781 = vmatmul.mubr.bf16.gmra.mrb[0].mxu0 %v648
    %v782 = vpop.f32.mrb[0].mxu0
    %v783 = vadd.f32 0.0, %v782
    %v784 = vpop.f32.mrb[0].mxu0
    %v785 = vpop.f32.mrb[0].mxu0
    %v786 = vadd.f32 0.0, %v785
    %v787 = vpop.f32.mrb[0].mxu0
    %788 = vmatprep.mubr.bf16.mxu0 0
    %789 = vmatmul.mubr.bf16.gmra.mrb[0].mxu0 %v651
    %v790 = vpop.f32.mrb[0].mxu0
    %v791 = vadd.f32 0.0, %v790
    %v792 = vpop.f32.mrb[0].mxu0
    %v793 = vpop.f32.mrb[0].mxu0
    %v794 = vadd.f32 0.0, %v793
    %v795 = vpop.f32.mrb[0].mxu0
    %796 = vmatprep.mubr.bf16.mxu0 0
    %797 = vmatmul.mubr.bf16.gmra.mrb[0].mxu0 %v654
    %v798 = vpop.f32.mrb[0].mxu0
    %v799 = vadd.f32 0.0, %v798
    %v800 = vpop.f32.mrb[0].mxu0
    %v801 = vpop.f32.mrb[0].mxu0
    %v802 = vadd.f32 0.0, %v801
    %v803 = vpop.f32.mrb[0].mxu0
    %804 = vmatprep.mubr.bf16.mxu0 0
    %805 = vmatmul.mubr.bf16.gmra.mrb[0].mxu0 %v657
    %v806 = vpop.f32.mrb[0].mxu0
    %v807 = vadd.f32 0.0, %v806
    %v808 = vpop.f32.mrb[0].mxu0
    %v809 = vpop.f32.mrb[0].mxu0
    %v810 = vadd.f32 0.0, %v809
    %v811 = vpop.f32.mrb[0].mxu0
    %812 = vmatprep.mubr.bf16.mxu0 0
    %813 = vmatmul.mubr.bf16.gmra.mrb[0].mxu0 %v660
    %v814 = vpop.f32.mrb[0].mxu0
    %v815 = vadd.f32 0.0, %v814
    %v816 = vpop.f32.mrb[0].mxu0
    %v817 = vpop.f32.mrb[0].mxu0
    %v818 = vadd.f32 0.0, %v817
    %v819 = vpop.f32.mrb[0].mxu0
    %820 = vmatprep.mubr.bf16.mxu0 0
    %821 = vmatmul.mubr.bf16.gmra.mrb[0].mxu0 %v663
    %v822 = vpop.f32.mrb[0].mxu0
    %v823 = vadd.f32 0.0, %v822
    %v824 = vpop.f32.mrb[0].mxu0
    %v825 = vpop.f32.mrb[0].mxu0
    %v826 = vadd.f32 0.0, %v825
    %v827 = vpop.f32.mrb[0].mxu0
    %828 = vdwg.mxu0
    %v829 = vadd.f32 %v434, %v703
    %v830 = vadd.f32 %v437, %v706
    %v831 = vadd.f32 %v442, %v711
    %v832 = vadd.f32 %v445, %v714
    %v833 = vadd.f32 %v450, %v719
    %v834 = vadd.f32 %v453, %v722
    %v835 = vadd.f32 %v458, %v727
    %v836 = vadd.f32 %v461, %v730
    %v837 = vadd.f32 %v466, %v735
    %v838 = vadd.f32 %v469, %v738
    %v839 = vadd.f32 %v474, %v743
    %v840 = vadd.f32 %v477, %v746
    %v841 = vadd.f32 %v482, %v751
    %v842 = vadd.f32 %v485, %v754
    %v843 = vadd.f32 %v490, %v759
    %v844 = vadd.f32 %v493, %v762
    %v845 = vadd.f32 %v498, %v767
    %v846 = vadd.f32 %v501, %v770
    %v847 = vadd.f32 %v506, %v775
    %v848 = vadd.f32 %v509, %v778
    %v849 = vadd.f32 %v514, %v783
    %v850 = vadd.f32 %v517, %v786
    %v851 = vadd.f32 %v522, %v791
    %v852 = vadd.f32 %v525, %v794
    %v853 = vadd.f32 %v530, %v799
    %v854 = vadd.f32 %v533, %v802
    %v855 = vadd.f32 %v538, %v807
    %v856 = vadd.f32 %v541, %v810
    %v857 = vadd.f32 %v546, %v815
    %v858 = vadd.f32 %v549, %v818
    %v859 = vadd.f32 %v554, %v823
    %v860 = vadd.f32 %v557, %v826
    %v861 = vld [vmem:[%s2] sm:$0x1]
    %v863 = vlaneseq
    %v864 = vshrl.u32 %v863, 7
    %v865 = vsub.s32 0, %v864
    %v866 = vrot.slane %v861, %v865
    %v868 = vadd.f32 %v829, %v866
    %v869 = vadd.f32 %v830, %v866
    %v870 = vadd.f32 %v831, %v866
    %v871 = vadd.f32 %v832, %v866
    %v872 = vadd.f32 %v833, %v866
    %v873 = vadd.f32 %v834, %v866
    %v874 = vadd.f32 %v835, %v866
    %v875 = vadd.f32 %v836, %v866
    %v876 = vadd.f32 %v837, %v866
    %v877 = vadd.f32 %v838, %v866
    %v878 = vadd.f32 %v839, %v866
    %v879 = vadd.f32 %v840, %v866
    %v880 = vadd.f32 %v841, %v866
    %v881 = vadd.f32 %v842, %v866
    %v882 = vadd.f32 %v843, %v866
    %v883 = vadd.f32 %v844, %v866
    %v884 = vadd.f32 %v845, %v866
    %v885 = vadd.f32 %v846, %v866
    %v886 = vadd.f32 %v847, %v866
    %v887 = vadd.f32 %v848, %v866
    %v888 = vadd.f32 %v849, %v866
    %v889 = vadd.f32 %v850, %v866
    %v890 = vadd.f32 %v851, %v866
    %v891 = vadd.f32 %v852, %v866
    %v892 = vadd.f32 %v853, %v866
    %v893 = vadd.f32 %v854, %v866
    %v894 = vadd.f32 %v855, %v866
    %v895 = vadd.f32 %v856, %v866
    %v896 = vadd.f32 %v857, %v866
    %v897 = vadd.f32 %v858, %v866
    %v898 = vadd.f32 %v859, %v866
    %v899 = vadd.f32 %v860, %v866
    %vm900 = vcmask 261120
    %v901 = vsel %vm900, %v868, 0.0
    %v902 = vsel %vm900, %v869, 0.0
    %v903 = vadd.f32 %v901, %v902
    %v904 = vsel %vm900, %v870, 0.0
    %v905 = vadd.f32 %v903, %v904
    %v906 = vsel %vm900, %v871, 0.0
    %v907 = vadd.f32 %v905, %v906
    %v908 = vsel %vm900, %v872, 0.0
    %v909 = vadd.f32 %v907, %v908
    %v910 = vsel %vm900, %v873, 0.0
    %v911 = vadd.f32 %v909, %v910
    %v912 = vsel %vm900, %v874, 0.0
    %v913 = vadd.f32 %v911, %v912
    %v914 = vsel %vm900, %v875, 0.0
    %v915 = vadd.f32 %v913, %v914
    %v916 = vsel %vm900, %v876, 0.0
    %v917 = vadd.f32 %v915, %v916
    %v918 = vsel %vm900, %v877, 0.0
    %v919 = vadd.f32 %v917, %v918
    %v920 = vsel %vm900, %v878, 0.0
    %v921 = vadd.f32 %v919, %v920
    %v922 = vsel %vm900, %v879, 0.0
    %v923 = vadd.f32 %v921, %v922
    %v924 = vsel %vm900, %v880, 0.0
    %v925 = vadd.f32 %v923, %v924
    %v926 = vsel %vm900, %v881, 0.0
    %v927 = vadd.f32 %v925, %v926
    %v928 = vsel %vm900, %v882, 0.0
    %v929 = vadd.f32 %v927, %v928
    %v930 = vsel %vm900, %v883, 0.0
    %v931 = vadd.f32 %v929, %v930
    %v932 = vsel %vm900, %v884, 0.0
    %v933 = vadd.f32 %v931, %v932
    %v934 = vsel %vm900, %v885, 0.0
    %v935 = vadd.f32 %v933, %v934
    %v936 = vsel %vm900, %v886, 0.0
    %v937 = vadd.f32 %v935, %v936
    %v938 = vsel %vm900, %v887, 0.0
    %v939 = vadd.f32 %v937, %v938
    %v940 = vsel %vm900, %v888, 0.0
    %v941 = vadd.f32 %v939, %v940
    %v942 = vsel %vm900, %v889, 0.0
    %v943 = vadd.f32 %v941, %v942
    %v944 = vsel %vm900, %v890, 0.0
    %v945 = vadd.f32 %v943, %v944
    %v946 = vsel %vm900, %v891, 0.0
    %v947 = vadd.f32 %v945, %v946
    %v948 = vsel %vm900, %v892, 0.0
    %v949 = vadd.f32 %v947, %v948
    %v950 = vsel %vm900, %v893, 0.0
    %v951 = vadd.f32 %v949, %v950
    %v952 = vsel %vm900, %v894, 0.0
    %v953 = vadd.f32 %v951, %v952
    %v954 = vsel %vm900, %v895, 0.0
    %v955 = vadd.f32 %v953, %v954
    %v956 = vsel %vm900, %v896, 0.0
    %v957 = vadd.f32 %v955, %v956
    %v958 = vsel %vm900, %v897, 0.0
    %v959 = vadd.f32 %v957, %v958
    %v960 = vsel %vm900, %v898, 0.0
    %v961 = vadd.f32 %v959, %v960
    %v962 = vsel %vm900, %v899, 0.0
    %v963 = vadd.f32 %v961, %v962
    %v964 = vrot.slane %v963, 4
    %v965 = vadd.f32 %v963, %v964
    %v966 = vrot.slane %v965, 2
    %v967 = vadd.f32 %v965, %v966
    %v968 = vrot.slane %v967, 1
    %v969 = vadd.f32 %v967, %v968
    %v970 = vrcp.pop 256.0
    %v971 = vmul.f32 %v969, %v970
    %v972 = vsub.f32 %v868, %v971
    %v973 = vsub.f32 %v869, %v971
    %v974 = vsub.f32 %v870, %v971
    %v975 = vsub.f32 %v871, %v971
    %v976 = vsub.f32 %v872, %v971
    %v977 = vsub.f32 %v873, %v971
    %v978 = vsub.f32 %v874, %v971
    %v979 = vsub.f32 %v875, %v971
    %v980 = vsub.f32 %v876, %v971
    %v981 = vsub.f32 %v877, %v971
    %v982 = vsub.f32 %v878, %v971
    %v983 = vsub.f32 %v879, %v971
    %v984 = vsub.f32 %v880, %v971
    %v985 = vsub.f32 %v881, %v971
    %v986 = vsub.f32 %v882, %v971
    %v987 = vsub.f32 %v883, %v971
    %v988 = vsub.f32 %v884, %v971
    %v989 = vsub.f32 %v885, %v971
    %v990 = vsub.f32 %v886, %v971
    %v991 = vsub.f32 %v887, %v971
    %v992 = vsub.f32 %v888, %v971
    %v993 = vsub.f32 %v889, %v971
    %v994 = vsub.f32 %v890, %v971
    %v995 = vsub.f32 %v891, %v971
    %v996 = vsub.f32 %v892, %v971
    %v997 = vsub.f32 %v893, %v971
    %v998 = vsub.f32 %v894, %v971
    %v999 = vsub.f32 %v895, %v971
    %v1000 = vsub.f32 %v896, %v971
    %v1001 = vsub.f32 %v897, %v971
    %v1002 = vsub.f32 %v898, %v971
    %v1003 = vsub.f32 %v899, %v971
    %v1004 = vmul.f32 %v972, %v972
    %v1005 = vmul.f32 %v973, %v973
    %v1006 = vmul.f32 %v974, %v974
    %v1007 = vmul.f32 %v975, %v975
    %v1008 = vmul.f32 %v976, %v976
    %v1009 = vmul.f32 %v977, %v977
    %v1010 = vmul.f32 %v978, %v978
    %v1011 = vmul.f32 %v979, %v979
    %v1012 = vmul.f32 %v980, %v980
    %v1013 = vmul.f32 %v981, %v981
    %v1014 = vmul.f32 %v982, %v982
    %v1015 = vmul.f32 %v983, %v983
    %v1016 = vmul.f32 %v984, %v984
    %v1017 = vmul.f32 %v985, %v985
    %v1018 = vmul.f32 %v986, %v986
    %v1019 = vmul.f32 %v987, %v987
    %v1020 = vmul.f32 %v988, %v988
    %v1021 = vmul.f32 %v989, %v989
    %v1022 = vmul.f32 %v990, %v990
    %v1023 = vmul.f32 %v991, %v991
    %v1024 = vmul.f32 %v992, %v992
    %v1025 = vmul.f32 %v993, %v993
    %v1026 = vmul.f32 %v994, %v994
    %v1027 = vmul.f32 %v995, %v995
    %v1028 = vmul.f32 %v996, %v996
    %v1029 = vmul.f32 %v997, %v997
    %v1030 = vmul.f32 %v998, %v998
    %v1031 = vmul.f32 %v999, %v999
    %v1032 = vmul.f32 %v1000, %v1000
    %v1033 = vmul.f32 %v1001, %v1001
    %v1034 = vmul.f32 %v1002, %v1002
    %v1035 = vmul.f32 %v1003, %v1003
    %v1036 = vsel %vm900, %v1004, 0.0
    %v1037 = vsel %vm900, %v1005, 0.0
    %v1038 = vadd.f32 %v1036, %v1037
    %v1039 = vsel %vm900, %v1006, 0.0
    %v1040 = vadd.f32 %v1038, %v1039
    %v1041 = vsel %vm900, %v1007, 0.0
    %v1042 = vadd.f32 %v1040, %v1041
    %v1043 = vsel %vm900, %v1008, 0.0
    %v1044 = vadd.f32 %v1042, %v1043
    %v1045 = vsel %vm900, %v1009, 0.0
    %v1046 = vadd.f32 %v1044, %v1045
    %v1047 = vsel %vm900, %v1010, 0.0
    %v1048 = vadd.f32 %v1046, %v1047
    %v1049 = vsel %vm900, %v1011, 0.0
    %v1050 = vadd.f32 %v1048, %v1049
    %v1051 = vsel %vm900, %v1012, 0.0
    %v1052 = vadd.f32 %v1050, %v1051
    %v1053 = vsel %vm900, %v1013, 0.0
    %v1054 = vadd.f32 %v1052, %v1053
    %v1055 = vsel %vm900, %v1014, 0.0
    %v1056 = vadd.f32 %v1054, %v1055
    %v1057 = vsel %vm900, %v1015, 0.0
    %v1058 = vadd.f32 %v1056, %v1057
    %v1059 = vsel %vm900, %v1016, 0.0
    %v1060 = vadd.f32 %v1058, %v1059
    %v1061 = vsel %vm900, %v1017, 0.0
    %v1062 = vadd.f32 %v1060, %v1061
    %v1063 = vsel %vm900, %v1018, 0.0
    %v1064 = vadd.f32 %v1062, %v1063
    %v1065 = vsel %vm900, %v1019, 0.0
    %v1066 = vadd.f32 %v1064, %v1065
    %v1067 = vsel %vm900, %v1020, 0.0
    %v1068 = vadd.f32 %v1066, %v1067
    %v1069 = vsel %vm900, %v1021, 0.0
    %v1070 = vadd.f32 %v1068, %v1069
    %v1071 = vsel %vm900, %v1022, 0.0
    %v1072 = vadd.f32 %v1070, %v1071
    %v1073 = vsel %vm900, %v1023, 0.0
    %v1074 = vadd.f32 %v1072, %v1073
    %v1075 = vsel %vm900, %v1024, 0.0
    %v1076 = vadd.f32 %v1074, %v1075
    %v1077 = vsel %vm900, %v1025, 0.0
    %v1078 = vadd.f32 %v1076, %v1077
    %v1079 = vsel %vm900, %v1026, 0.0
    %v1080 = vadd.f32 %v1078, %v1079
    %v1081 = vsel %vm900, %v1027, 0.0
    %v1082 = vadd.f32 %v1080, %v1081
    %v1083 = vsel %vm900, %v1028, 0.0
    %v1084 = vadd.f32 %v1082, %v1083
    %v1085 = vsel %vm900, %v1029, 0.0
    %v1086 = vadd.f32 %v1084, %v1085
    %v1087 = vsel %vm900, %v1030, 0.0
    %v1088 = vadd.f32 %v1086, %v1087
    %v1089 = vsel %vm900, %v1031, 0.0
    %v1090 = vadd.f32 %v1088, %v1089
    %v1091 = vsel %vm900, %v1032, 0.0
    %v1092 = vadd.f32 %v1090, %v1091
    %v1093 = vsel %vm900, %v1033, 0.0
    %v1094 = vadd.f32 %v1092, %v1093
    %v1095 = vsel %vm900, %v1034, 0.0
    %v1096 = vadd.f32 %v1094, %v1095
    %v1097 = vsel %vm900, %v1035, 0.0
    %v1098 = vadd.f32 %v1096, %v1097
    %v1099 = vrot.slane %v1098, 4
    %v1100 = vadd.f32 %v1098, %v1099
    %v1101 = vrot.slane %v1100, 2
    %v1102 = vadd.f32 %v1100, %v1101
    %v1103 = vrot.slane %v1102, 1
    %v1104 = vadd.f32 %v1102, %v1103
    %v1105 = vmul.f32 %v1104, %v970
    %v1106 = vadd.f32 %v1105, 1e-05
    %v1107 = vrsqrt.pop %v1106
    %v1108 = vmul.f32 %v972, %v1107
    %v1109 = vmul.f32 %v973, %v1107
    %v1110 = vmul.f32 %v974, %v1107
    %v1111 = vmul.f32 %v975, %v1107
    %v1112 = vmul.f32 %v976, %v1107
    %v1113 = vmul.f32 %v977, %v1107
    %v1114 = vmul.f32 %v978, %v1107
    %v1115 = vmul.f32 %v979, %v1107
    %v1116 = vmul.f32 %v980, %v1107
    %v1117 = vmul.f32 %v981, %v1107
    %v1118 = vmul.f32 %v982, %v1107
    %v1119 = vmul.f32 %v983, %v1107
    %v1120 = vmul.f32 %v984, %v1107
    %v1121 = vmul.f32 %v985, %v1107
    %v1122 = vmul.f32 %v986, %v1107
    %v1123 = vmul.f32 %v987, %v1107
    %v1124 = vmul.f32 %v988, %v1107
    %v1125 = vmul.f32 %v989, %v1107
    %v1126 = vmul.f32 %v990, %v1107
    %v1127 = vmul.f32 %v991, %v1107
    %v1128 = vmul.f32 %v992, %v1107
    %v1129 = vmul.f32 %v993, %v1107
    %v1130 = vmul.f32 %v994, %v1107
    %v1131 = vmul.f32 %v995, %v1107
    %v1132 = vmul.f32 %v996, %v1107
    %v1133 = vmul.f32 %v997, %v1107
    %v1134 = vmul.f32 %v998, %v1107
    %v1135 = vmul.f32 %v999, %v1107
    %v1136 = vmul.f32 %v1000, %v1107
    %v1137 = vmul.f32 %v1001, %v1107
    %v1138 = vmul.f32 %v1002, %v1107
    %v1139 = vmul.f32 %v1003, %v1107
    %v1140 = vld [vmem:[%s3] sm:$0x1]
    %v1142 = vlaneseq
    %v1143 = vshrl.u32 %v1142, 7
    %v1144 = vsub.s32 0, %v1143
    %v1145 = vrot.slane %v1140, %v1144
    %v1147 = vmul.f32 %v1108, %v1145
    %v1148 = vmul.f32 %v1109, %v1145
    %v1149 = vmul.f32 %v1110, %v1145
    %v1150 = vmul.f32 %v1111, %v1145
    %v1151 = vmul.f32 %v1112, %v1145
    %v1152 = vmul.f32 %v1113, %v1145
    %v1153 = vmul.f32 %v1114, %v1145
    %v1154 = vmul.f32 %v1115, %v1145
    %v1155 = vmul.f32 %v1116, %v1145
    %v1156 = vmul.f32 %v1117, %v1145
    %v1157 = vmul.f32 %v1118, %v1145
    %v1158 = vmul.f32 %v1119, %v1145
    %v1159 = vmul.f32 %v1120, %v1145
    %v1160 = vmul.f32 %v1121, %v1145
    %v1161 = vmul.f32 %v1122, %v1145
    %v1162 = vmul.f32 %v1123, %v1145
    %v1163 = vmul.f32 %v1124, %v1145
    %v1164 = vmul.f32 %v1125, %v1145
    %v1165 = vmul.f32 %v1126, %v1145
    %v1166 = vmul.f32 %v1127, %v1145
    %v1167 = vmul.f32 %v1128, %v1145
    %v1168 = vmul.f32 %v1129, %v1145
    %v1169 = vmul.f32 %v1130, %v1145
    %v1170 = vmul.f32 %v1131, %v1145
    %v1171 = vmul.f32 %v1132, %v1145
    %v1172 = vmul.f32 %v1133, %v1145
    %v1173 = vmul.f32 %v1134, %v1145
    %v1174 = vmul.f32 %v1135, %v1145
    %v1175 = vmul.f32 %v1136, %v1145
    %v1176 = vmul.f32 %v1137, %v1145
    %v1177 = vmul.f32 %v1138, %v1145
    %v1178 = vmul.f32 %v1139, %v1145
    %v1179 = vld [vmem:[%s4] sm:$0x1]
    %v1181 = vlaneseq
    %v1182 = vshrl.u32 %v1181, 7
    %v1183 = vsub.s32 0, %v1182
    %v1184 = vrot.slane %v1179, %v1183
    %v1186 = vadd.f32 %v1147, %v1184
    %v1187 = vadd.f32 %v1148, %v1184
    %v1188 = vadd.f32 %v1149, %v1184
    %v1189 = vadd.f32 %v1150, %v1184
    %v1190 = vadd.f32 %v1151, %v1184
    %v1191 = vadd.f32 %v1152, %v1184
    %v1192 = vadd.f32 %v1153, %v1184
    %v1193 = vadd.f32 %v1154, %v1184
    %v1194 = vadd.f32 %v1155, %v1184
    %v1195 = vadd.f32 %v1156, %v1184
    %v1196 = vadd.f32 %v1157, %v1184
    %v1197 = vadd.f32 %v1158, %v1184
    %v1198 = vadd.f32 %v1159, %v1184
    %v1199 = vadd.f32 %v1160, %v1184
    %v1200 = vadd.f32 %v1161, %v1184
    %v1201 = vadd.f32 %v1162, %v1184
    %v1202 = vadd.f32 %v1163, %v1184
    %v1203 = vadd.f32 %v1164, %v1184
    %v1204 = vadd.f32 %v1165, %v1184
    %v1205 = vadd.f32 %v1166, %v1184
    %v1206 = vadd.f32 %v1167, %v1184
    %v1207 = vadd.f32 %v1168, %v1184
    %v1208 = vadd.f32 %v1169, %v1184
    %v1209 = vadd.f32 %v1170, %v1184
    %v1210 = vadd.f32 %v1171, %v1184
    %v1211 = vadd.f32 %v1172, %v1184
    %v1212 = vadd.f32 %v1173, %v1184
    %v1213 = vadd.f32 %v1174, %v1184
    %v1214 = vadd.f32 %v1175, %v1184
    %v1215 = vadd.f32 %v1176, %v1184
    %v1216 = vadd.f32 %v1177, %v1184
    %v1217 = vadd.f32 %v1178, %v1184
    %v1218 = vmax.f32 %v1186, 0.0
    %v1219 = vmax.f32 %v1187, 0.0
    %v1220 = vmax.f32 %v1188, 0.0
    %v1221 = vmax.f32 %v1189, 0.0
    %v1222 = vmax.f32 %v1190, 0.0
    %v1223 = vmax.f32 %v1191, 0.0
    %v1224 = vmax.f32 %v1192, 0.0
    %v1225 = vmax.f32 %v1193, 0.0
    %v1226 = vmax.f32 %v1194, 0.0
    %v1227 = vmax.f32 %v1195, 0.0
    %v1228 = vmax.f32 %v1196, 0.0
    %v1229 = vmax.f32 %v1197, 0.0
    %v1230 = vmax.f32 %v1198, 0.0
    %v1231 = vmax.f32 %v1199, 0.0
    %v1232 = vmax.f32 %v1200, 0.0
    %v1233 = vmax.f32 %v1201, 0.0
    %v1234 = vmax.f32 %v1202, 0.0
    %v1235 = vmax.f32 %v1203, 0.0
    %v1236 = vmax.f32 %v1204, 0.0
    %v1237 = vmax.f32 %v1205, 0.0
    %v1238 = vmax.f32 %v1206, 0.0
    %v1239 = vmax.f32 %v1207, 0.0
    %v1240 = vmax.f32 %v1208, 0.0
    %v1241 = vmax.f32 %v1209, 0.0
    %v1242 = vmax.f32 %v1210, 0.0
    %v1243 = vmax.f32 %v1211, 0.0
    %v1244 = vmax.f32 %v1212, 0.0
    %v1245 = vmax.f32 %v1213, 0.0
    %v1246 = vmax.f32 %v1214, 0.0
    %v1247 = vmax.f32 %v1215, 0.0
    %v1248 = vmax.f32 %v1216, 0.0
    %v1249 = vmax.f32 %v1217, 0.0
    %1250 = vst.msk [vmem:[#allocation2] sm:$0xff] %vm900, %v1218
    %1251 = vst.msk [vmem:[#allocation2 + $0x8] sm:$0xff] %vm900, %v1219
    %1252 = vst.msk [vmem:[#allocation2 + $0x10] sm:$0xff] %vm900, %v1220
    %1253 = vst.msk [vmem:[#allocation2 + $0x18] sm:$0xff] %vm900, %v1221
    %1254 = vst.msk [vmem:[#allocation2 + $0x20] sm:$0xff] %vm900, %v1222
    %1255 = vst.msk [vmem:[#allocation2 + $0x28] sm:$0xff] %vm900, %v1223
    %1256 = vst.msk [vmem:[#allocation2 + $0x30] sm:$0xff] %vm900, %v1224
    %1257 = vst.msk [vmem:[#allocation2 + $0x38] sm:$0xff] %vm900, %v1225
    %1258 = vst.msk [vmem:[#allocation2 + $0x40] sm:$0xff] %vm900, %v1226
    %1259 = vst.msk [vmem:[#allocation2 + $0x48] sm:$0xff] %vm900, %v1227
    %1260 = vst.msk [vmem:[#allocation2 + $0x50] sm:$0xff] %vm900, %v1228
    %1261 = vst.msk [vmem:[#allocation2 + $0x58] sm:$0xff] %vm900, %v1229
    %1262 = vst.msk [vmem:[#allocation2 + $0x60] sm:$0xff] %vm900, %v1230
    %1263 = vst.msk [vmem:[#allocation2 + $0x68] sm:$0xff] %vm900, %v1231
    %1264 = vst.msk [vmem:[#allocation2 + $0x70] sm:$0xff] %vm900, %v1232
    %1265 = vst.msk [vmem:[#allocation2 + $0x78] sm:$0xff] %vm900, %v1233
    %1266 = vst.msk [vmem:[#allocation2 + $0x80] sm:$0xff] %vm900, %v1234
    %1267 = vst.msk [vmem:[#allocation2 + $0x88] sm:$0xff] %vm900, %v1235
    %1268 = vst.msk [vmem:[#allocation2 + $0x90] sm:$0xff] %vm900, %v1236
    %1269 = vst.msk [vmem:[#allocation2 + $0x98] sm:$0xff] %vm900, %v1237
    %1270 = vst.msk [vmem:[#allocation2 + $0xa0] sm:$0xff] %vm900, %v1238
    %1271 = vst.msk [vmem:[#allocation2 + $0xa8] sm:$0xff] %vm900, %v1239
    %1272 = vst.msk [vmem:[#allocation2 + $0xb0] sm:$0xff] %vm900, %v1240
    %1273 = vst.msk [vmem:[#allocation2 + $0xb8] sm:$0xff] %vm900, %v1241
    %1274 = vst.msk [vmem:[#allocation2 + $0xc0] sm:$0xff] %vm900, %v1242
    %1275 = vst.msk [vmem:[#allocation2 + $0xc8] sm:$0xff] %vm900, %v1243
    %1276 = vst.msk [vmem:[#allocation2 + $0xd0] sm:$0xff] %vm900, %v1244
    %1277 = vst.msk [vmem:[#allocation2 + $0xd8] sm:$0xff] %vm900, %v1245
    %1278 = vst.msk [vmem:[#allocation2 + $0xe0] sm:$0xff] %vm900, %v1246
    %1279 = vst.msk [vmem:[#allocation2 + $0xe8] sm:$0xff] %vm900, %v1247
    %1280 = vst.msk [vmem:[#allocation2 + $0xf0] sm:$0xff] %vm900, %v1248
    %1281 = vst.msk [vmem:[#allocation2 + $0xf8] sm:$0xff] %vm900, %v1249
    // Predicated region
    $region22: #{tpu_custom_call.1} parent=1 // pred_check
      _
    $region23: #{tpu_custom_call.1} parent=1 // pred_check_branch
      %1283 = sbr.rel (0) target = $region25
    $region24: #{tpu_custom_call.1} parent=1 // pred_region
      %s1285 = ssub.s32 4096, 4096
      %1286 = vsyncadd [#allocation3], %s1285
      %s1287 = sshll.u32 [#allocation2], 4
      %s1288 = int_to_ptr.vmem [resolvable:$true] %s1287
      %1293 = dma.vmem_to_hbm [thread:$0]  %s1288, 4096, %s5, [#allocation3], 128, 128, 8
    $region25: #{tpu_custom_call.1} parent=1 // pred_fallthru
      _
    // Predicated region
    $region26: #{tpu_custom_call.1} parent=1 // pred_check
      _
    $region27: #{tpu_custom_call.1} parent=1 // pred_check_branch
      %1295 = sbr.rel (0) target = $region29
    $region28: #{tpu_custom_call.1} parent=1 // pred_region
      %1296 = dma.done [#allocation3], 4096
    $region29: #{tpu_custom_call.1} parent=1 // pred_fallthru
      _
    %1297 = vsyncpa [#allocation3], 1

</llo_original>
